<compile_context>
chip_gen: v7x
topology: tpu7x:2x2x1
jax: 0.10.0
libtpu: 0.0.40
codegen_flags: <defaults>
</compile_context>

<pallas_src>
import functools

import jax
import jax.numpy as jnp
import numpy as np
from jax.experimental import pallas as pl
from jax.experimental.pallas import tpu as pltpu


def _round_up(x, m):
    return ((x + m - 1) // m) * m


def _pick_tile(dim, candidates):
    """Pick a tile from `candidates` (descending) for an already-aligned dim.

    Uses a single tile if the dim fits the largest candidate, otherwise the
    largest candidate whose padding waste is <= 12.5%; falls back to the
    smallest candidate (minimal waste)."""
    if dim <= candidates[0]:
        return dim
    for c in candidates:
        if (_round_up(dim, c) - dim) * 8 <= dim:
            return c
    return candidates[-1]


@functools.lru_cache(maxsize=None)
def _tpu_tile_config():
    """Per-generation tile candidates / VMEM budget (fallback = v7x-safe)."""
    vmem_bytes = 64 * 1024 * 1024
    try:
        info = pltpu.get_tpu_info()
        vmem_bytes = int(getattr(info, "vmem_capacity_bytes", vmem_bytes))
    except Exception:
        pass
    if vmem_bytes >= 100 * 1024 * 1024:
        # v5e / v6e: 128 MiB VMEM, one TensorCore per chip -> big tiles, big tk.
        return dict(
            tm_cands=(512, 256, 128, 64, 32, 16, 8),
            tn_cands=(1024, 512, 256, 128),
            tk_cands=(2048, 1024, 512, 256, 128),
            vmem_limit=96 * 1024 * 1024,
            two_cores=False,
        )
    # v7x: 64 MiB VMEM per TensorCore, 2 TensorCores per chip -> smaller K
    # tiles, tighter VMEM cap, and keep the parallel grid >= 2 tiles.
    return dict(
        tm_cands=(512, 256, 128, 64, 32, 16, 8),
        tn_cands=(1024, 512, 256, 128),
        tk_cands=(1024, 512, 256, 128),
        vmem_limit=56 * 1024 * 1024,
        two_cores=True,
    )


def _split_for_two_cores(cfg, Mp, Np, tm, tn):
    # v7x shards the "parallel" grid axes over 2 TensorCores: a 1x1 parallel
    # grid would idle one core, so halve a tile when it divides cleanly.
    if cfg["two_cores"] and (Mp // tm) * (Np // tn) == 1:
        if tn % 256 == 0:
            tn //= 2
        elif tm % 16 == 0:
            tm //= 2
    return tm, tn


# ---------------------------------------------------------------------------
# Kernels
# ---------------------------------------------------------------------------
def _linear_kernel_single_k(x_ref, w_ref, b_ref, o_ref):
    # Whole contraction in one MXU pass; fused bias add + cast + store.
    acc = jnp.dot(x_ref[...], w_ref[...], preferred_element_type=jnp.float32)
    o_ref[...] = (acc + b_ref[...].astype(jnp.float32)).astype(o_ref.dtype)


def _linear_kernel_multi_k_f32out(x_ref, w_ref, b_ref, o_ref):
    # f32 output: accumulate directly into the (k-resident) output block —
    # no VMEM scratch and no epilogue copy.
    k = pl.program_id(2)

    @pl.when(k == 0)
    def _():
        o_ref[...] = jnp.broadcast_to(b_ref[...].astype(jnp.float32), o_ref.shape)

    o_ref[...] += jnp.dot(x_ref[...], w_ref[...], preferred_element_type=jnp.float32)


def _linear_kernel_multi_k_scratch(x_ref, w_ref, b_ref, o_ref, acc_ref):
    # Narrow output dtype: accumulate in f32 VMEM scratch, cast once at the end.
    k = pl.program_id(2)

    @pl.when(k == 0)
    def _():
        acc_ref[...] = jnp.broadcast_to(
            b_ref[...].astype(jnp.float32), acc_ref.shape
        )

    acc_ref[...] += jnp.dot(x_ref[...], w_ref[...], preferred_element_type=jnp.float32)

    @pl.when(k == pl.num_programs(2) - 1)
    def _():
        o_ref[...] = acc_ref[...].astype(o_ref.dtype)


# ---------------------------------------------------------------------------
# pallas_call wrapper on pre-padded operands
# ---------------------------------------------------------------------------
def _linear_padded(xp, wp, bp, out_dtype, tm, tn, tk, vmem_limit):
    """Run the kernel on operands already padded to exact tile multiples."""
    Mp, Kp = xp.shape
    _, Np = wp.shape
    n_k = Kp // tk

    cost = pl.CostEstimate(
        flops=2 * Mp * Np * Kp,
        transcendentals=0,
        bytes_accessed=int(
            xp.size * xp.dtype.itemsize
            + wp.size * wp.dtype.itemsize
            + bp.size * bp.dtype.itemsize
            + Mp * Np * np.dtype(out_dtype).itemsize
        ),
    )

    if n_k == 1:
        # 2-D grid: no accumulator, no pl.when — fused dot + bias + store.
        return pl.pallas_call(
            _linear_kernel_single_k,
            out_shape=jax.ShapeDtypeStruct((Mp, Np), out_dtype),
            grid_spec=pltpu.PrefetchScalarGridSpec(
                num_scalar_prefetch=0,
                grid=(Mp // tm, Np // tn),
                in_specs=[
                    pl.BlockSpec((tm, tk), lambda i, j: (i, 0)),   # x tile
                    pl.BlockSpec((tk, tn), lambda i, j: (0, j)),   # W tile
                    pl.BlockSpec((1, tn), lambda i, j: (0, j)),    # bias tile
                ],
                out_specs=pl.BlockSpec((tm, tn), lambda i, j: (i, j)),
            ),
            compiler_params=pltpu.CompilerParams(
                dimension_semantics=("parallel", "parallel"),
                vmem_limit_bytes=vmem_limit,
            ),
            cost_estimate=cost,
        )(xp, wp, bp)

    if np.dtype(out_dtype) == np.dtype(jnp.float32):
        kernel, scratch = _linear_kernel_multi_k_f32out, []
    else:
        kernel = _linear_kernel_multi_k_scratch
        scratch = [pltpu.VMEM((tm, tn), jnp.float32)]

    return pl.pallas_call(
        kernel,
        out_shape=jax.ShapeDtypeStruct((Mp, Np), out_dtype),
        grid_spec=pltpu.PrefetchScalarGridSpec(
            num_scalar_prefetch=0,
            grid=(Mp // tm, Np // tn, n_k),          # reduction (K) axis last
            in_specs=[
                pl.BlockSpec((tm, tk), lambda i, j, k: (i, k)),
                pl.BlockSpec((tk, tn), lambda i, j, k: (k, j)),
                pl.BlockSpec((1, tn), lambda i, j, k: (0, j)),
            ],
            out_specs=pl.BlockSpec((tm, tn), lambda i, j, k: (i, j)),
            scratch_shapes=scratch,
        ),
        compiler_params=pltpu.CompilerParams(
            dimension_semantics=("parallel", "parallel", "arbitrary"),
            vmem_limit_bytes=vmem_limit,
        ),
        cost_estimate=cost,
    )(xp, wp, bp)


# ---------------------------------------------------------------------------
# Public API
# ---------------------------------------------------------------------------
class PallasLinear:
    """Pallas-backed drop-in for the reference Linear module's forward pass.

    Init mirrors the PyTorch module: w ~ Normal(0, std), b = zeros(dim_out).
    The weight/bias are zero-padded to tile multiples and cast to
    `compute_dtype` ONCE here; each forward() only pads/casts x.
    Default compute_dtype=bf16 (f32 MXU accumulation, f32 output); pass
    compute_dtype=jnp.float32 for exact-f32 module semantics.
    """

    def __init__(self, dim_in, dim_out, std=0.05, *, key=None,
                 compute_dtype=jnp.bfloat16, out_dtype=jnp.float32):
        if key is None:
            key = jax.random.PRNGKey(0)
        self.dim_in, self.dim_out = dim_in, dim_out
        self.w = std * jax.random.normal(key, (dim_in, dim_out), jnp.float32)
        self.b = jnp.zeros((dim_out,), jnp.float32)
        self.compute_dtype = compute_dtype if compute_dtype is not None else jnp.float32
        self.out_dtype = out_dtype

        cfg = _tpu_tile_config()
        self._cfg = cfg
        Kp0 = _round_up(dim_in, 128)
        Np0 = _round_up(dim_out, 128)
        self._tk = _pick_tile(Kp0, cfg["tk_cands"])
        self._tn = _pick_tile(Np0, cfg["tn_cands"])
        self._Kp = _round_up(Kp0, self._tk)
        self._Np = _round_up(Np0, self._tn)
        # One-time pad + cast of W / b (kept resident across forward calls).
        self._wp = (jnp.zeros((self._Kp, self._Np), self.compute_dtype)
                    .at[:dim_in, :dim_out].set(self.w.astype(self.compute_dtype)))
        self._bp = (jnp.zeros((1, self._Np), jnp.float32)
                    .at[0, :dim_out].set(self.b))

    def forward(self, x):
        assert x.ndim == 2 and x.shape[1] == self.dim_in
        B = x.shape[0]
        Mp0 = _round_up(B, 8)
        tm = _pick_tile(Mp0, self._cfg["tm_cands"])
        Mp = _round_up(Mp0, tm)
        tm, tn = _split_for_two_cores(self._cfg, Mp, self._Np, tm, self._tn)
        xp = (jnp.zeros((Mp, self._Kp), self.compute_dtype)
              .at[:B, :self.dim_in].set(x.astype(self.compute_dtype)))
        out = _linear_padded(xp, self._wp, self._bp, self.out_dtype,
                             tm, tn, self._tk, self._cfg["vmem_limit"])
        return out[:B, :self.dim_out]

    __call__ = forward

    def get_param(self):
        return (self.w, self.b)

    # TODO(synk): backward() (weight/bias gradients) is not implemented — this is a forward-only kernel.


def linear_forward(x, w, b, *, compute_dtype=jnp.bfloat16):
    """One-shot functional forward (pads W/b per call).

    Prefer PallasLinear when the same weights are reused.  Note: output dtype
    follows x.dtype even when compute_dtype=bf16 (bf16 operands, f32 output).
    """
    assert x.ndim == 2, "Linear expects a 2-D input (batch, dim_in)"
    B, dim_in = x.shape
    dim_in_w, dim_out = w.shape
    assert dim_in == dim_in_w and b.shape == (dim_out,)
    out_dtype = x.dtype
    cdt = compute_dtype if compute_dtype is not None else x.dtype
    cfg = _tpu_tile_config()

    Mp0, Kp0, Np0 = _round_up(B, 8), _round_up(dim_in, 128), _round_up(dim_out, 128)
    tm = _pick_tile(Mp0, cfg["tm_cands"])
    tk = _pick_tile(Kp0, cfg["tk_cands"])
    tn = _pick_tile(Np0, cfg["tn_cands"])
    Mp, Kp, Np = _round_up(Mp0, tm), _round_up(Kp0, tk), _round_up(Np0, tn)
    tm, tn = _split_for_two_cores(cfg, Mp, Np, tm, tn)

    # Zero padding is neutral for the dot product / bias and sliced off below.
    xp = jnp.zeros((Mp, Kp), cdt).at[:B, :dim_in].set(x.astype(cdt))
    wp = jnp.zeros((Kp, Np), cdt).at[:dim_in, :dim_out].set(w.astype(cdt))
    bp = jnp.zeros((1, Np), jnp.float32).at[0, :dim_out].set(b.astype(jnp.float32))

    out = _linear_padded(xp, wp, bp, out_dtype, tm, tn, tk, cfg["vmem_limit"])
    return out[:B, :dim_out]


if __name__ == "__main__":
    key = jax.random.PRNGKey(0)
    k_w, k_x, k_x2, k_w2, k_b2, k_w3, k_x3 = jax.random.split(key, 7)

    # --- Case 1: module demo shapes (batch=8, dim_in=32, dim_out=64) -------
    batch, dim_in, dim_out, std = 8, 32, 64, 0.05
    layer = PallasLinear(dim_in, dim_out, std=std, key=k_w)   # default: bf16 operands
    x = jax.random.normal(k_x, (batch, dim_in), dtype=jnp.float32)

    out = jax.block_until_ready(layer(x))
    ref = jnp.dot(x, layer.w, precision=jax.lax.Precision.HIGHEST) + layer.b
    assert out.shape == (batch, dim_out) and out.dtype == jnp.float32
    assert jnp.allclose(out, ref, atol=3e-2, rtol=3e-2)       # bf16-operand tolerance

    # Second call reuses the pre-padded / pre-cast weight (no W re-pad per call).
    out_again = jax.block_until_ready(layer(x))
    assert jnp.allclose(out_again, out)

    # f32-operand validation path (exact module semantics, tighter tolerance).
    out_f32 = jax.block_until_ready(
        linear_forward(x, layer.w, layer.b, compute_dtype=jnp.float32))
    assert jnp.allclose(out_f32, ref, atol=2e-3, rtol=2e-3)

    # --- Case 2: non-aligned shapes (padding + functional per-call path) ---
    B2, K2, N2 = 16, 600, 700
    w2 = std * jax.random.normal(k_w2, (K2, N2), dtype=jnp.float32)
    b2 = 0.1 * jax.random.normal(k_b2, (N2,), dtype=jnp.float32)
    x2 = jax.random.normal(k_x2, (B2, K2), dtype=jnp.float32)
    out2 = jax.block_until_ready(linear_forward(x2, w2, b2))
    ref2 = jnp.dot(x2, w2, precision=jax.lax.Precision.HIGHEST) + b2
    assert out2.shape == (B2, N2)
    assert jnp.allclose(out2, ref2, atol=5e-2, rtol=2e-2)

    # --- Case 3: large contraction exercising the multi-K accumulator path -
    B3, K3, N3 = 24, 2560, 512
    layer3 = PallasLinear(K3, N3, std=std, key=k_w3)
    x3 = jax.random.normal(k_x3, (B3, K3), dtype=jnp.float32)
    out3 = jax.block_until_ready(layer3(x3))
    ref3 = jnp.dot(x3, layer3.w, precision=jax.lax.Precision.HIGHEST) + layer3.b
    assert out3.shape == (B3, N3)
    assert jnp.allclose(out3, ref3, atol=1e-1, rtol=2e-2)

    print("KERNEL_OK")
</pallas_src>

<mosaic_0001>
module attributes {stable_mosaic.version = 11 : i64} {
  func.func @_linear_kernel_single_k(%arg0: i32, %arg1: i32, %arg2: memref<8x128xbf16, #tpu.memory_space<vmem>>, %arg3: memref<128x128xbf16, #tpu.memory_space<vmem>>, %arg4: memref<1x128xf32, #tpu.memory_space<vmem>>, %arg5: memref<8x128xf32, #tpu.memory_space<vmem>>) attributes {dimension_semantics = [#tpu.dimension_semantics<parallel>, #tpu.dimension_semantics<parallel>], iteration_bounds = array<i64: 1, 1>, scalar_prefetch = 0 : i64, scratch_operands = 0 : i64, tpu.core_type = #tpu.core_type<tc>, window_params = [{transform_indices = @transform_0, window_bounds = array<i64: 8, 128>}, {transform_indices = @transform_1, window_bounds = array<i64: 128, 128>}, {transform_indices = @transform_2, window_bounds = array<i64: 1, 128>}, {transform_indices = @transform_3, window_bounds = array<i64: 8, 128>}]} {
    %c0 = arith.constant 0 : index
    %c0_0 = arith.constant 0 : index
    %0 = vector.load %arg2[%c0, %c0_0] : memref<8x128xbf16, #tpu.memory_space<vmem>>, vector<8x128xbf16>
    %c0_1 = arith.constant 0 : index
    %c0_2 = arith.constant 0 : index
    %1 = vector.load %arg3[%c0_1, %c0_2] : memref<128x128xbf16, #tpu.memory_space<vmem>>, vector<128x128xbf16>
    %cst = arith.constant dense<0.000000e+00> : vector<8x128xf32>
    %2 = tpu.matmul %0, %1, %cst {dimension_numbers = #tpu.dot_dimension_numbers<[1], [0], [0], [1], [0, 0, 1, 1], [], []>} : vector<8x128xbf16>, vector<128x128xbf16>, vector<8x128xf32> -> vector<8x128xf32>
    %c0_3 = arith.constant 0 : index
    %c0_4 = arith.constant 0 : index
    %3 = vector.load %arg4[%c0_3, %c0_4] : memref<1x128xf32, #tpu.memory_space<vmem>>, vector<1x128xf32>
    %4 = vector.broadcast %3 : vector<1x128xf32> to vector<8x128xf32>
    %5 = arith.addf %2, %4 : vector<8x128xf32>
    %c0_5 = arith.constant 0 : index
    %c0_6 = arith.constant 0 : index
    %6 = vector.load %arg5[%c0_5, %c0_6] : memref<8x128xf32, #tpu.memory_space<vmem>>, vector<8x128xf32>
    tpu.vector_store %arg5[%c0_5, %c0_6], %5 {strides = array<i32>} : memref<8x128xf32, #tpu.memory_space<vmem>>, vector<8x128xf32>,
    return
  }
  func.func @transform_0(%arg0: i32, %arg1: i32) -> (i32, i32) {
    %c0_i32 = arith.constant 0 : i32
    %c0_i32_0 = arith.constant 0 : i32
    return %arg0, %c0_i32 : i32, i32
  }
  func.func @transform_1(%arg0: i32, %arg1: i32) -> (i32, i32) {
    %c0_i32 = arith.constant 0 : i32
    %c0_i32_0 = arith.constant 0 : i32
    return %c0_i32, %arg1 : i32, i32
  }
  func.func @transform_2(%arg0: i32, %arg1: i32) -> (i32, i32) {
    %c0_i32 = arith.constant 0 : i32
    %c0_i32_0 = arith.constant 0 : i32
    return %c0_i32, %arg1 : i32, i32
  }
  func.func @transform_3(%arg0: i32, %arg1: i32) -> (i32, i32) {
    %c0_i32 = arith.constant 0 : i32
    return %arg0, %arg1 : i32, i32
  }
}

</mosaic_0001>

<llo_original>
// kernel: tpu_custom_call.1
$region0: #{tpu_custom_call.1}
  #allocation0 [shape = 'u32[]', space=smem, size = 0x4, offset = 0x4, fixed_abs, tag = 'smem constant byte address 0x4 - core index']
  #allocation1 [shape = 'u32[144,128]{1,0:T(1,128)}', space=vmem, size = 0x12000, scoped, tag = 'internal scratch']
  %s0 = inlined_call_operand.hbm [shape: bf16[8,128], index: 0, kind: input, shape index: {}]
  %s1 = inlined_call_operand.hbm [shape: bf16[128,128], index: 1, kind: input, shape index: {}]
  %s2 = inlined_call_operand.vmem [shape: f32[1,128], index: 2, kind: input, shape index: {}]
  %s3 = inlined_call_operand.hbm [shape: f32[8,128], index: 3, kind: output, shape index: {}]
  %s4 = sld [smem:[#allocation0]]
  $region30: #{tpu_custom_call.1} parent=0
    _
  %s6 = ssub.s32 1, %s4
  %s7 = scalar_select 0, %s6, %s4
  $region1: #{tpu_custom_call.1} parent=0
    #allocation2 [shape = 'u8[2048]{0}', space=vmem, size = 0x800, scoped, tag = 'input window, operand 0, single buffered']
    #allocation3 [shape = 's32[1]{0}', space=sflag, size = 0x4, scoped, tag = 'scoped memory for tpu_custom_call.1']
    #allocation4 [shape = 's32[1]{0}', space=sflag, size = 0x4, scoped, tag = 'scoped memory for tpu_custom_call.1']
    #allocation5 [shape = 'u8[32768]{0}', space=vmem, size = 0x8000, scoped, tag = 'input window, operand 1, single buffered']
    #allocation6 [shape = 's32[1]{0}', space=sflag, size = 0x4, scoped, tag = 'scoped memory for tpu_custom_call.1']
    #allocation7 [shape = 'u8[4096]{0}', space=vmem, size = 0x1000, scoped, tag = 'output window, operand 0, single buffered']
    %8 = vsyncpa [#allocation3], 0
    %9 = vsyncpa [#allocation6], 0
    %10 = vsyncpa [#allocation4], 0
    // Predicated region
    $region2: #{tpu_custom_call.1} parent=1 // pred_check
      _
    $region3: #{tpu_custom_call.1} parent=1 // pred_check_branch
      %12 = sbr.rel (0) target = $region5
    $region4: #{tpu_custom_call.1} parent=1 // pred_region
      %s14 = ssub.s32 64, 64
      %15 = vsyncadd [#allocation3], %s14
      %s17 = sshll.u32 [#allocation2], 4
      %s18 = int_to_ptr.vmem [resolvable:$true] %s17
      %20 = dma.hbm_to_vmem [thread:$0]  %s0, 64, %s18, [#allocation3]
    $region5: #{tpu_custom_call.1} parent=1 // pred_fallthru
      _
    // Predicated region
    $region6: #{tpu_custom_call.1} parent=1 // pred_check
      _
    $region7: #{tpu_custom_call.1} parent=1 // pred_check_branch
      %22 = sbr.rel (0) target = $region9
    $region8: #{tpu_custom_call.1} parent=1 // pred_region
      %s24 = ssub.s32 1024, 1024
      %25 = vsyncadd [#allocation6], %s24
      %s26 = sshll.u32 [#allocation5], 4
      %s27 = int_to_ptr.vmem [resolvable:$true] %s26
      %32 = dma.hbm_to_vmem [thread:$0]  %s1, 1024, %s27, [#allocation6], 64, 64, 4
    $region9: #{tpu_custom_call.1} parent=1 // pred_fallthru
      _
    // Predicated region
    $region10: #{tpu_custom_call.1} parent=1 // pred_check
      _
    $region11: #{tpu_custom_call.1} parent=1 // pred_check_branch
      %34 = sbr.rel (0) target = $region13
    $region12: #{tpu_custom_call.1} parent=1 // pred_region
      _
    $region13: #{tpu_custom_call.1} parent=1 // pred_fallthru
      _
    // Predicated region
    $region14: #{tpu_custom_call.1} parent=1 // pred_check
      _
    $region15: #{tpu_custom_call.1} parent=1 // pred_check_branch
      %36 = sbr.rel (0) target = $region17
    $region16: #{tpu_custom_call.1} parent=1 // pred_region
      %37 = dma.done [#allocation3], 64
    $region17: #{tpu_custom_call.1} parent=1 // pred_fallthru
      _
    // Predicated region
    $region18: #{tpu_custom_call.1} parent=1 // pred_check
      _
    $region19: #{tpu_custom_call.1} parent=1 // pred_check_branch
      %39 = sbr.rel (0) target = $region21
    $region20: #{tpu_custom_call.1} parent=1 // pred_region
      %40 = dma.done [#allocation6], 1024
    $region21: #{tpu_custom_call.1} parent=1 // pred_fallthru
      _
    %v42 = vld [vmem:[#allocation2] sm:$0xf]
    %v43 = vld [vmem:[#allocation5] sm:$0xf]
    %v44 = vld [vmem:[#allocation5 + $0x4] sm:$0xf]
    %v45 = vld [vmem:[#allocation5 + $0x8] sm:$0xf]
    %v46 = vld [vmem:[#allocation5 + $0xc] sm:$0xf]
    %v47 = vld [vmem:[#allocation5 + $0x10] sm:$0xf]
    %v48 = vld [vmem:[#allocation5 + $0x14] sm:$0xf]
    %v49 = vld [vmem:[#allocation5 + $0x18] sm:$0xf]
    %v50 = vld [vmem:[#allocation5 + $0x1c] sm:$0xf]
    %v51 = vld [vmem:[#allocation5 + $0x20] sm:$0xf]
    %v52 = vld [vmem:[#allocation5 + $0x24] sm:$0xf]
    %v53 = vld [vmem:[#allocation5 + $0x28] sm:$0xf]
    %v54 = vld [vmem:[#allocation5 + $0x2c] sm:$0xf]
    %v55 = vld [vmem:[#allocation5 + $0x30] sm:$0xf]
    %v56 = vld [vmem:[#allocation5 + $0x34] sm:$0xf]
    %v57 = vld [vmem:[#allocation5 + $0x38] sm:$0xf]
    %v58 = vld [vmem:[#allocation5 + $0x3c] sm:$0xf]
    %v59 = vld [vmem:[%s2] sm:$0x1]
    %v61 = vlaneseq
    %v62 = vshrl.u32 %v61, 7
    %v63 = vsub.s32 0, %v62
    %v64 = vrot.slane %v59, %v63
    %v82 = vunpack.c.l.b16 %v43
    %v83 = vunpack.c.l.b16 %v44
    %v84 = vunpack.c.l.b16 %v45
    %v85 = vunpack.c.l.b16 %v46
    %v86 = vunpack.c.l.b16 %v47
    %v87 = vunpack.c.l.b16 %v48
    %v88 = vunpack.c.l.b16 %v49
    %v89 = vunpack.c.l.b16 %v50
    %v90 = vunpack.c.l.b16 %v51
    %v91 = vunpack.c.l.b16 %v52
    %v92 = vunpack.c.l.b16 %v53
    %v93 = vunpack.c.l.b16 %v54
    %v94 = vunpack.c.l.b16 %v55
    %v95 = vunpack.c.l.b16 %v56
    %v96 = vunpack.c.l.b16 %v57
    %v97 = vunpack.c.l.b16 %v58
    %v98 = vpack.c.b16 %v83, %v82
    %v99 = vpack.c.b16 %v85, %v84
    %v100 = vpack.c.b16 %v87, %v86
    %v101 = vpack.c.b16 %v89, %v88
    %v102 = vpack.c.b16 %v91, %v90
    %v103 = vpack.c.b16 %v93, %v92
    %v104 = vpack.c.b16 %v95, %v94
    %v105 = vpack.c.b16 %v97, %v96
    %114 = vmatprep.subr.bf16.mxu0 0
    %115 = vmatpush1.bf16.msra.mxu0 %v98
    %116 = vmatprep.subr.bf16.mxu0 0
    %117 = vmatpush1.bf16.msra.mxu0 %v99
    %118 = vmatprep.subr.bf16.mxu0 0
    %119 = vmatpush1.bf16.msra.mxu0 %v100
    %120 = vmatprep.subr.bf16.mxu0 0
    %121 = vmatpush1.bf16.msra.mxu0 %v101
    %122 = vmatprep.subr.bf16.mxu0 0
    %123 = vmatpush1.bf16.msra.mxu0 %v102
    %124 = vmatprep.subr.bf16.mxu0 0
    %125 = vmatpush1.bf16.msra.mxu0 %v103
    %126 = vmatprep.subr.bf16.mxu0 0
    %127 = vmatpush1.bf16.msra.mxu0 %v104
    %128 = vmatprep.subr.bf16.mxu0 0
    %129 = vmatpush1.bf16.msra.mxu0 %v105
    %130 = vmatprep.subr.bf16.mxu0 0
    %131 = vmatpush1.bf16.msra.mxu0 0
    %132 = vmatprep.subr.bf16.mxu0 0
    %133 = vmatpush1.bf16.msra.mxu0 0
    %134 = vmatprep.subr.bf16.mxu0 0
    %135 = vmatpush1.bf16.msra.mxu0 0
    %136 = vmatprep.subr.bf16.mxu0 0
    %137 = vmatpush1.bf16.msra.mxu0 0
    %138 = vmatprep.subr.bf16.mxu0 0
    %139 = vmatpush1.bf16.msra.mxu0 0
    %140 = vmatprep.subr.bf16.mxu0 0
    %141 = vmatpush1.bf16.msra.mxu0 0
    %142 = vmatprep.subr.bf16.mxu0 0
    %143 = vmatpush1.bf16.msra.mxu0 0
    %144 = vmatprep.subr.bf16.mxu0 0
    %145 = vmatpush1.bf16.msra.mxu0 0
    %146 = vmatprep.mubr.bf16.mxu0 0
    %147 = vmatmul.mubr.bf16.gmra.mrb[0].mxu0 %v42
    %v148 = vpop.f32.mrb[0].mxu0
    %v149 = vadd.f32 %v64, %v148
    %v150 = vpop.f32.mrb[0].mxu0
    %v151 = vpop.f32.mrb[0].mxu0
    %v152 = vpop.f32.mrb[0].mxu0
    %153 = vdwg.mxu0
    %154 = vst [vmem:[#allocation7] sm:$0xff] %v149
    // Predicated region
    $region22: #{tpu_custom_call.1} parent=1 // pred_check
      _
    $region23: #{tpu_custom_call.1} parent=1 // pred_check_branch
      %156 = sbr.rel (0) target = $region25
    $region24: #{tpu_custom_call.1} parent=1 // pred_region
      %s158 = ssub.s32 128, 128
      %159 = vsyncadd [#allocation4], %s158
      %s161 = sshll.u32 [#allocation7], 4
      %s162 = int_to_ptr.vmem [resolvable:$true] %s161
      %164 = dma.vmem_to_hbm [thread:$0]  %s162, 128, %s3, [#allocation4]
    $region25: #{tpu_custom_call.1} parent=1 // pred_fallthru
      _
    // Predicated region
    $region26: #{tpu_custom_call.1} parent=1 // pred_check
      _
    $region27: #{tpu_custom_call.1} parent=1 // pred_check_branch
      %166 = sbr.rel (0) target = $region29
    $region28: #{tpu_custom_call.1} parent=1 // pred_region
      %167 = dma.done [#allocation4], 128
    $region29: #{tpu_custom_call.1} parent=1 // pred_fallthru
      _
    %168 = vsyncpa [#allocation3], 1
    %169 = vsyncpa [#allocation6], 1
    %170 = vsyncpa [#allocation4], 1

</llo_original>
